<compile_context>
chip_gen: v5e
topology: v5e:2x2
jax: 0.10.0
libtpu: 0.0.40
codegen_flags: <defaults>
</compile_context>

<pallas_src>
import functools

import jax
import jax.numpy as jnp
from jax import lax
from jax.experimental import pallas as pl
from jax.experimental.pallas import tpu as pltpu

_LANE = 128
_SUBLANE = 8
# 2048 rows * 128 lanes * 4 B = 1 MiB per input block.  2 inputs x 2 pipeline
# buffers = 4 MiB: comfortably under v5e's 16 MiB scoped default and v7x's
# 64 MiB physical VMEM, while already at ~roofline block size (>=512 rows).
_MAX_BLOCK_ROWS = 2048
# Split the reduction across 2 core-slices: uses both TensorCores on v7x,
# degenerates to two sequential (and cheap) slices on v5e/v6e.
_NUM_CORE_SPLITS = 2


def _rmse_kernel(yhat_ref, y_ref, out_ref, acc_ref, *,
                 block_rows, steps_per_core, n_elements):
    c = pl.program_id(0)          # core-split index ("parallel")
    i = pl.program_id(1)          # reduction step within this core ("arbitrary")

    @pl.when(i == 0)
    def _():
        acc_ref[...] = jnp.zeros_like(acc_ref)

    # Accumulate in f32 regardless of input dtype (inputs pass through at
    # native dtype; cast happens here, on-chip).
    d = yhat_ref[...].astype(jnp.float32) - y_ref[...].astype(jnp.float32)

    # Mask padded / out-of-range elements (only the last block of each core
    # slice, or fully-redundant clamped blocks, can have any).  Pure VPU work.
    step = c * steps_per_core + i
    base = step * (block_rows * _LANE)
    row_ids = lax.broadcasted_iota(jnp.int32, (block_rows, _LANE), 0)
    lane_ids = lax.broadcasted_iota(jnp.int32, (block_rows, _LANE), 1)
    flat_idx = base + row_ids * _LANE + lane_ids
    dsq = jnp.where(flat_idx < n_elements, d * d, jnp.float32(0.0))

    # Lane-parallel accumulation: fold the block down to the (8,128) vreg shape
    # with elementwise vreg adds -- no cross-lane/XLU reduce in the hot loop.
    acc_ref[...] += dsq.reshape(block_rows // _SUBLANE, _SUBLANE, _LANE).sum(axis=0)

    # Emit this core's per-element partial sums; final reduce/divide/sqrt is
    # tiny work done once in the wrapper.
    @pl.when(i == pl.num_programs(1) - 1)
    def _():
        out_ref[...] = acc_ref[...]


def rmse_loss(yhat, y, eps=1e-6):
    assert yhat.shape == y.shape, "yhat / y must have identical shapes"
    n = int(yhat.size)

    # Flatten (no dtype cast) and present as a lane-dense (rows, 128) slab.
    yf = yhat.reshape(-1)
    tf = y.reshape(-1)
    tile_elems = _SUBLANE * _LANE
    pad = (-n) % tile_elems
    if pad:
        # Only taken for ragged sizes; the demo / typical shapes skip this.
        # Padded elements are also masked in-kernel, so the value is irrelevant.
        yf = jnp.pad(yf, (0, pad))
        tf = jnp.pad(tf, (0, pad))
    rows = (n + pad) // _LANE                      # multiple of 8
    yf = yf.reshape(rows, _LANE)                   # <-- rank now matches BlockSpec
    tf = tf.reshape(rows, _LANE)

    block_rows = min(rows, _MAX_BLOCK_ROWS)        # multiple of 8
    nblocks = pl.cdiv(rows, block_rows)
    # Only split across cores when there is actually more than one block.
    core_splits = _NUM_CORE_SPLITS if nblocks >= _NUM_CORE_SPLITS else 1
    steps_per_core = pl.cdiv(nblocks, core_splits)
    last_block = nblocks - 1

    def in_map(c, i):
        # Clamp so we never index past the end of the slab; clamped (redundant)
        # blocks are fully masked out inside the kernel via flat_idx >= n.
        step = c * steps_per_core + i
        return (jnp.minimum(step, last_block), 0)

    kernel = functools.partial(
        _rmse_kernel,
        block_rows=block_rows,
        steps_per_core=steps_per_core,
        n_elements=n,
    )

    partials = pl.pallas_call(
        kernel,
        out_shape=jax.ShapeDtypeStruct(
            (core_splits, _SUBLANE, _LANE), jnp.float32),
        grid_spec=pltpu.PrefetchScalarGridSpec(
            num_scalar_prefetch=0,
            grid=(core_splits, steps_per_core),
            in_specs=[
                pl.BlockSpec((block_rows, _LANE), in_map),
                pl.BlockSpec((block_rows, _LANE), in_map),
            ],
            # Per-core (8,128) partial sums; leading dim squeezed in-kernel.
            out_specs=pl.BlockSpec((None, _SUBLANE, _LANE),
                                   lambda c, i: (c, 0, 0)),
            scratch_shapes=[pltpu.VMEM((_SUBLANE, _LANE), jnp.float32)],
        ),
        compiler_params=pltpu.CompilerParams(
            dimension_semantics=("parallel", "arbitrary"),
        ),
    )(yf, tf)

    # Final scalar epilogue (tiny): total SSE -> MSE -> sqrt(MSE + eps).
    mse = jnp.sum(partials) / jnp.float32(n)
    return jnp.sqrt(mse + jnp.float32(eps))


if __name__ == "__main__":
    key = jax.random.PRNGKey(0)
    k1, k2 = jax.random.split(key)
    # Small NCHW-like regression output, matching the PyTorch module's usage.
    yhat = jax.random.normal(k1, (2, 4, 16, 16), dtype=jnp.float32)
    y = jax.random.normal(k2, (2, 4, 16, 16), dtype=jnp.float32)

    loss = jax.block_until_ready(rmse_loss(yhat, y))

    # Pure-JAX reference for sanity.
    ref = jnp.sqrt(jnp.mean((yhat - y) ** 2) + 1e-6)
    assert jnp.allclose(loss, ref, rtol=1e-5, atol=1e-6), (loss, ref)

    print("KERNEL_OK")
</pallas_src>

<mosaic_0001>
module attributes {stable_mosaic.version = 11 : i64} {
  func.func @_rmse_kernel(%arg0: i32, %arg1: i32, %arg2: memref<16x128xf32, #tpu.memory_space<vmem>>, %arg3: memref<16x128xf32, #tpu.memory_space<vmem>>, %arg4: memref<1x8x128xf32, #tpu.memory_space<vmem>>, %arg5: memref<8x128xf32, #tpu.memory_space<vmem>>) attributes {dimension_semantics = [#tpu.dimension_semantics<parallel>, #tpu.dimension_semantics<arbitrary>], iteration_bounds = array<i64: 1, 1>, scalar_prefetch = 0 : i64, scratch_operands = 1 : i64, tpu.core_type = #tpu.core_type<tc>, window_params = [{transform_indices = @transform_0, window_bounds = array<i64: 16, 128>}, {transform_indices = @transform_1, window_bounds = array<i64: 16, 128>}, {transform_indices = @transform_2, window_bounds = array<i64: 1, 8, 128>}]} {
    %c0_i32 = arith.constant 0 : i32
    %0 = arith.cmpi eq, %arg1, %c0_i32 : i32
    %1 = arith.extui %0 : i1 to i32
    %c0_i32_0 = arith.constant 0 : i32
    %2 = arith.cmpi ne, %1, %c0_i32_0 : i32
    scf.if %2 {
      %cst_12 = arith.constant 0.000000e+00 : f32
      %29 = vector.broadcast %cst_12 : f32 to vector<8x128xf32>
      %c0_13 = arith.constant 0 : index
      %c0_14 = arith.constant 0 : index
      %30 = vector.load %arg5[%c0_13, %c0_14] : memref<8x128xf32, #tpu.memory_space<vmem>>, vector<8x128xf32>
      tpu.vector_store %arg5[%c0_13, %c0_14], %29 {strides = array<i32>} : memref<8x128xf32, #tpu.memory_space<vmem>>, vector<8x128xf32>,
    } else {
    }
    %c0 = arith.constant 0 : index
    %c0_1 = arith.constant 0 : index
    %3 = vector.load %arg2[%c0, %c0_1] : memref<16x128xf32, #tpu.memory_space<vmem>>, vector<16x128xf32>
    %c0_2 = arith.constant 0 : index
    %c0_3 = arith.constant 0 : index
    %4 = vector.load %arg3[%c0_2, %c0_3] : memref<16x128xf32, #tpu.memory_space<vmem>>, vector<16x128xf32>
    %5 = arith.subf %3, %4 : vector<16x128xf32>
    %c1_i32 = arith.constant 1 : i32
    %6 = arith.muli %arg0, %c1_i32 : i32
    %7 = arith.addi %6, %arg1 : i32
    %c2048_i32 = arith.constant 2048 : i32
    %8 = arith.muli %7, %c2048_i32 : i32
    %9 = tpu.iota {dimensions = array<i32: 0>} : vector<16x128xi32>
    %10 = tpu.iota {dimensions = array<i32: 1>} : vector<16x128xi32>
    %c128_i32 = arith.constant 128 : i32
    %11 = vector.broadcast %c128_i32 : i32 to vector<16x128xi32>
    %12 = arith.muli %9, %11 : vector<16x128xi32>
    %13 = vector.broadcast %8 : i32 to vector<16x128xi32>
    %14 = arith.addi %13, %12 : vector<16x128xi32>
    %15 = arith.addi %14, %10 : vector<16x128xi32>
    %c2048_i32_4 = arith.constant 2048 : i32
    %16 = vector.broadcast %c2048_i32_4 : i32 to vector<16x128xi32>
    %17 = arith.cmpi slt, %15, %16 : vector<16x128xi32>
    %18 = arith.mulf %5, %5 : vector<16x128xf32>
    %cst = arith.constant 0.000000e+00 : f32
    %19 = vector.broadcast %cst : f32 to vector<16x128xf32>
    %20 = arith.select %17, %18, %19 : vector<16x128xi1>, vector<16x128xf32>
    %c0_5 = arith.constant 0 : index
    %c0_6 = arith.constant 0 : index
    %21 = vector.load %arg5[%c0_5, %c0_6] : memref<8x128xf32, #tpu.memory_space<vmem>>, vector<8x128xf32>
    %22 = vector.shape_cast %20 : vector<16x128xf32> to vector<2x8x128xf32>
    %cst_7 = arith.constant dense<0.000000e+00> : vector<8x128xf32>
    %23 = vector.multi_reduction <add>, %22, %cst_7 [0] : vector<2x8x128xf32> to vector<8x128xf32>
    %24 = arith.addf %21, %23 : vector<8x128xf32>
    %c0_8 = arith.constant 0 : index
    %c0_9 = arith.constant 0 : index
    %25 = vector.load %arg5[%c0_8, %c0_9] : memref<8x128xf32, #tpu.memory_space<vmem>>, vector<8x128xf32>
    tpu.vector_store %arg5[%c0_8, %c0_9], %24 {strides = array<i32>} : memref<8x128xf32, #tpu.memory_space<vmem>>, vector<8x128xf32>,
    %c0_i32_10 = arith.constant 0 : i32
    %26 = arith.cmpi eq, %arg1, %c0_i32_10 : i32
    %27 = arith.extui %26 : i1 to i32
    %c0_i32_11 = arith.constant 0 : i32
    %28 = arith.cmpi ne, %27, %c0_i32_11 : i32
    scf.if %28 {
      %c0_12 = arith.constant 0 : index
      %c0_13 = arith.constant 0 : index
      %29 = vector.load %arg5[%c0_12, %c0_13] : memref<8x128xf32, #tpu.memory_space<vmem>>, vector<8x128xf32>
      %c0_14 = arith.constant 0 : index
      %c0_15 = arith.constant 0 : index
      %c0_16 = arith.constant 0 : index
      %30 = vector.load %arg4[%c0_14, %c0_15, %c0_16] : memref<1x8x128xf32, #tpu.memory_space<vmem>>, vector<1x8x128xf32>
      %31 = vector.shape_cast %30 : vector<1x8x128xf32> to vector<8x128xf32>
      %32 = vector.shape_cast %29 : vector<8x128xf32> to vector<1x8x128xf32>
      tpu.vector_store %arg4[%c0_14, %c0_15, %c0_16], %32 {strides = array<i32>} : memref<1x8x128xf32, #tpu.memory_space<vmem>>, vector<1x8x128xf32>,
    } else {
    }
    return
  }
  func.func @transform_0(%arg0: i32, %arg1: i32) -> (i32, i32) {
    %c1_i32 = arith.constant 1 : i32
    %0 = arith.muli %arg0, %c1_i32 : i32
    %1 = arith.addi %0, %arg1 : i32
    %c0_i32 = arith.constant 0 : i32
    %2 = arith.minsi %1, %c0_i32 : i32
    %c0_i32_0 = arith.constant 0 : i32
    %c0_i32_1 = arith.constant 0 : i32
    return %2, %c0_i32_0 : i32, i32
  }
  func.func @transform_1(%arg0: i32, %arg1: i32) -> (i32, i32) {
    %c1_i32 = arith.constant 1 : i32
    %0 = arith.muli %arg0, %c1_i32 : i32
    %1 = arith.addi %0, %arg1 : i32
    %c0_i32 = arith.constant 0 : i32
    %2 = arith.minsi %1, %c0_i32 : i32
    %c0_i32_0 = arith.constant 0 : i32
    %c0_i32_1 = arith.constant 0 : i32
    return %2, %c0_i32_0 : i32, i32
  }
  func.func @transform_2(%arg0: i32, %arg1: i32) -> (i32, i32, i32) {
    %c0_i32 = arith.constant 0 : i32
    %c0_i32_0 = arith.constant 0 : i32
    %c0_i32_1 = arith.constant 0 : i32
    return %arg0, %c0_i32, %c0_i32_0 : i32, i32, i32
  }
}

</mosaic_0001>

<llo_original>
// kernel: tpu_custom_call.1
$region0: #{tpu_custom_call.1}
  #allocation0 [shape = 'u32[]', space=smem, size = 0x4, offset = 0x4, fixed_abs, tag = 'smem constant byte address 0x4 - core index']
  #allocation1 [shape = 'u32[72,128]{1,0:T(1,128)}', space=vmem, size = 0x9000, scoped, tag = 'internal scratch']
  #allocation2 [shape = 'f32[8,128]{1,0:T(8,128)}', space=vmem, size = 0x1000, scoped, tag = 'scratch operand']
  %s0 = inlined_call_operand.hbm [shape: f32[16,128], index: 0, kind: input, shape index: {}]
  %s1 = inlined_call_operand.hbm [shape: f32[16,128], index: 1, kind: input, shape index: {}]
  %s2 = inlined_call_operand.hbm [shape: f32[1,8,128], index: 2, kind: output, shape index: {}]
  %s3 = sld [smem:[#allocation0]]
  $region34: #{tpu_custom_call.1} parent=0
    _
  %s5 = ssub.s32 1, %s3
  %s6 = scalar_select 0, %s5, %s3
  $region1: #{tpu_custom_call.1} parent=0
    #allocation3 [shape = 'u8[8192]{0}', space=vmem, size = 0x2000, scoped, tag = 'input window, operand 0, single buffered']
    #allocation4 [shape = 's32[1]{0}', space=sflag, size = 0x4, scoped, tag = 'scoped memory for tpu_custom_call.1']
    #allocation5 [shape = 's32[1]{0}', space=sflag, size = 0x4, scoped, tag = 'scoped memory for tpu_custom_call.1']
    #allocation6 [shape = 'u8[8192]{0}', space=vmem, size = 0x2000, scoped, tag = 'input window, operand 1, single buffered']
    #allocation7 [shape = 's32[1]{0}', space=sflag, size = 0x4, scoped, tag = 'scoped memory for tpu_custom_call.1']
    #allocation8 [shape = 'u8[4096]{0}', space=vmem, size = 0x1000, scoped, tag = 'output window, operand 0, single buffered']
    %7 = vsyncpa [#allocation4], 0
    %8 = vsyncpa [#allocation7], 0
    %9 = vsyncpa [#allocation5], 0
    // Predicated region
    $region2: #{tpu_custom_call.1} parent=1 // pred_check
      _
    $region3: #{tpu_custom_call.1} parent=1 // pred_check_branch
      %11 = sbr.rel (0) target = $region5
    $region4: #{tpu_custom_call.1} parent=1 // pred_region
      %s12 = sadd.s32 0, 0
      %p13 = scmp.lt.s32.totalorder %s12, 0
      %s14 = scalar_select %p13, %s12, 0
      %s15 = smul.u32 2, %s14
      %17 = vsyncadd [#allocation4], 0
      %s18 = smul.addr %s15, 8
      %s19 = scalar_lea.hbm %s0, %s18
      %s20 = sshll.u32 %s19, 4
      %s21 = int_to_ptr.hbm [resolvable:$true] %s20
      %s22 = sshll.u32 [#allocation3], 4
      %s23 = int_to_ptr.vmem [resolvable:$true] %s22
      %28 = dma.hbm_to_vmem [thread:$0]  %s21, 256, %s23, [#allocation4], 128, 128, 8
    $region5: #{tpu_custom_call.1} parent=1 // pred_fallthru
      _
    // Predicated region
    $region6: #{tpu_custom_call.1} parent=1 // pred_check
      _
    $region7: #{tpu_custom_call.1} parent=1 // pred_check_branch
      %30 = sbr.rel (0) target = $region9
    $region8: #{tpu_custom_call.1} parent=1 // pred_region
      %s31 = sadd.s32 0, 0
      %p32 = scmp.lt.s32.totalorder %s31, 0
      %s33 = scalar_select %p32, %s31, 0
      %s34 = smul.u32 2, %s33
      %36 = vsyncadd [#allocation7], 0
      %s37 = smul.addr %s34, 8
      %s38 = scalar_lea.hbm %s1, %s37
      %s39 = sshll.u32 %s38, 4
      %s40 = int_to_ptr.hbm [resolvable:$true] %s39
      %s41 = sshll.u32 [#allocation6], 4
      %s42 = int_to_ptr.vmem [resolvable:$true] %s41
      %47 = dma.hbm_to_vmem [thread:$0]  %s40, 256, %s42, [#allocation7], 128, 128, 8
    $region9: #{tpu_custom_call.1} parent=1 // pred_fallthru
      _
    // Predicated region
    $region10: #{tpu_custom_call.1} parent=1 // pred_check
      _
    $region11: #{tpu_custom_call.1} parent=1 // pred_check_branch
      %49 = sbr.rel (0) target = $region13
    $region12: #{tpu_custom_call.1} parent=1 // pred_region
      %51 = dma.done [#allocation4], 256
    $region13: #{tpu_custom_call.1} parent=1 // pred_fallthru
      _
    // Predicated region
    $region14: #{tpu_custom_call.1} parent=1 // pred_check
      _
    $region15: #{tpu_custom_call.1} parent=1 // pred_check_branch
      %53 = sbr.rel (0) target = $region17
    $region16: #{tpu_custom_call.1} parent=1 // pred_region
      %55 = dma.done [#allocation7], 256
    $region17: #{tpu_custom_call.1} parent=1 // pred_fallthru
      _
    %s56 = sadd.s32 0, 0
    %p57 = scmp.lt.s32.totalorder %s56, 0
    %s58 = scalar_select %p57, %s56, 0
    %s59 = smul.u32 2, %s58
    %s60 = sadd.s32 0, 0
    %p61 = scmp.lt.s32.totalorder %s60, 0
    %s62 = scalar_select %p61, %s60, 0
    %s63 = smul.u32 2, %s62
    %p64 = scmp.eq.s32.totalorder 0, 0
    // Predicated region
    $region18: #{tpu_custom_call.1} parent=1 // pred_check
      %p65 = pneg %p64
    $region19: #{tpu_custom_call.1} parent=1 // pred_check_branch
      %67 = sbr.rel (%p65) target = $region21
    $region20: #{tpu_custom_call.1} parent=1 // pred_region
      %68 = vst [vmem:[#allocation2] sm:$0xff] 0.0
    $region21: #{tpu_custom_call.1} parent=1 // pred_fallthru
      _
    %v69 = vld [vmem:[#allocation3] sm:$0xff]
    %v70 = vld [vmem:[#allocation3 + $0x8] sm:$0xff]
    %v71 = vld [vmem:[#allocation6] sm:$0xff]
    %v72 = vld [vmem:[#allocation6 + $0x8] sm:$0xff]
    %v73 = vsub.f32 %v69, %v71
    %v74 = vsub.f32 %v70, %v72
    %s75 = sadd.s32 0, 0
    %s76 = smul.u32 %s75, 2048
    %v77 = vlaneseq
    %v78 = vshrl.u32 %v77, 7
    %v79 = vadd.s32 %v78, 8
    %v80 = vlaneseq
    %v81 = vand.u32 %v80, 127
    %v82 = vmul.u32 %v78, 128
    %v83 = vmul.u32 %v79, 128
    %v84 = vstv %s76
    %v85 = vadd.s32 %v84, %v82
    %v86 = vadd.s32 %v84, %v83
    %v87 = vadd.s32 %v85, %v81
    %v88 = vadd.s32 %v86, %v81
    %vm89 = vcmp.lt.s32.totalorder %v87, 2048
    %vm90 = vcmp.lt.s32.totalorder %v88, 2048
    %v91 = vmul.f32 %v73, %v73
    %v92 = vmul.f32 %v74, %v74
    %v93 = vsel %vm89, %v91, 0.0
    %v94 = vsel %vm90, %v92, 0.0
    %v95 = vld [vmem:[#allocation2] sm:$0xff]
    %v96 = vadd.f32 %v93, %v94
    %v97 = vadd.f32 %v95, %v96
    %98 = vst [vmem:[#allocation2] sm:$0xff] %v97
    // Predicated region
    $region22: #{tpu_custom_call.1} parent=1 // pred_check
      %p99 = pneg %p64
    $region23: #{tpu_custom_call.1} parent=1 // pred_check_branch
      %101 = sbr.rel (%p99) target = $region25
    $region24: #{tpu_custom_call.1} parent=1 // pred_region
      %v102 = vld [vmem:[#allocation2] sm:$0xff]
      %103 = vst [vmem:[#allocation8] sm:$0xff] %v102
    $region25: #{tpu_custom_call.1} parent=1 // pred_fallthru
      _
    // Predicated region
    $region26: #{tpu_custom_call.1} parent=1 // pred_check
      _
    $region27: #{tpu_custom_call.1} parent=1 // pred_check_branch
      %105 = sbr.rel (0) target = $region29
    $region28: #{tpu_custom_call.1} parent=1 // pred_region
      %107 = vsyncadd [#allocation5], 0
      %s109 = sshll.u32 [#allocation8], 4
      %s110 = int_to_ptr.vmem [resolvable:$true] %s109
      %s111 = sshll.u32 %s2, 4
      %s112 = int_to_ptr.hbm [resolvable:$true] %s111
      %114 = dma.vmem_to_hbm [thread:$0]  %s110, 128, %s112, [#allocation5]
    $region29: #{tpu_custom_call.1} parent=1 // pred_fallthru
      _
    // Predicated region
    $region30: #{tpu_custom_call.1} parent=1 // pred_check
      _
    $region31: #{tpu_custom_call.1} parent=1 // pred_check_branch
      %116 = sbr.rel (0) target = $region33
    $region32: #{tpu_custom_call.1} parent=1 // pred_region
      %118 = dma.done [#allocation5], 128
    $region33: #{tpu_custom_call.1} parent=1 // pred_fallthru
      _
    %119 = vsyncpa [#allocation4], 1
    %120 = vsyncpa [#allocation7], 1
    %121 = vsyncpa [#allocation5], 1

</llo_original>
